<compile_context>
chip_gen: v7x
topology: tpu7x:2x2x1
jax: 0.10.0
libtpu: 0.0.40
codegen_flags: <defaults>
</compile_context>

<pallas_src>
import jax
import jax.numpy as jnp
from jax.experimental import pallas as pl
from jax.experimental.pallas import tpu as pltpu


def _round_up(x, m):
    return (x + m - 1) // m * m


def sentence_encoder_kernel(tok_ref, table_ref, w_ref, b_ref, out_ref, acc_ref):
    """tok_ref: (tb, tl, 1) int32; table_ref: (Vp, H) bf16; w_ref: (H, Hp) bf16 (pre-transposed);
    b_ref: (1, Hp) f32; out_ref: (tb, Hp) f32; acc_ref: (tb, Hp) f32 running-max scratch."""
    li = pl.program_id(1)

    @pl.when(li == 0)
    def _init():
        acc_ref[...] = jnp.full(acc_ref.shape, -jnp.inf, acc_ref.dtype)

    tb, tl, _ = tok_ref.shape
    vp = table_ref.shape[0]
    hp = w_ref.shape[1]

    # --- fused embedding gather: one-hot (tb*tl, Vp) @ table (Vp, H) on the MXU ---
    ids = tok_ref[...]                                              # (tb, tl, 1) int32
    iota_v = jax.lax.broadcasted_iota(jnp.int32, (tb, tl, vp), 2)   # (tb, tl, Vp)
    onehot = jnp.where(ids == iota_v, 1.0, 0.0).astype(jnp.bfloat16)
    onehot = onehot.reshape(tb * tl, vp)                            # (M, Vp), M = tb*tl
    emb = jnp.dot(onehot, table_ref[...],
                  preferred_element_type=jnp.float32)               # (M, H) f32 (exact gather)

    # --- Linear, bias deferred until after the max: (M, H) @ (H, Hp) ---
    y = jnp.dot(emb.astype(jnp.bfloat16), w_ref[...],
                preferred_element_type=jnp.float32)                 # (M, Hp) f32

    # --- running max over the sequence axis (max_pool1d over L) ---
    tile_max = jnp.max(y.reshape(tb, tl, hp), axis=1)               # (tb, Hp)
    acc_ref[...] = jnp.maximum(acc_ref[...], tile_max)

    @pl.when(li == pl.num_programs(1) - 1)
    def _finish():
        out_ref[...] = acc_ref[...] + b_ref[...]                    # bias once, after the max


def sentence_encoder(tokens, emb_table, weight, bias, *, tb=None, tl=None):
    """tokens: (B, L) int; emb_table: (V, H); weight: (H_out, H_in); bias: (H,) -> (B, H)."""
    B, L = tokens.shape
    V, H = emb_table.shape

    HP = _round_up(max(H, 128), 128)    # lane-dense output / matmul-N width
    VP = _round_up(V, 8)                # sublane-aligned vocab (extra rows are zero, never hit)

    # Tile selection: full extents at toy shapes; for real shapes aim at tb*tl >= 128
    # (MXU M dim) with tl a multiple of 8 dividing L, and size tiles for v7x's 64 MiB VMEM.
    if tb is None:
        tb = B if B <= 8 else 8
    if tl is None:
        tl = L
    assert B % tb == 0 and L % tl == 0, "tiles must divide (B, L)"

    # ---- layout plumbing in the wrapper (cheap XLA glue) ----
    tokens3 = tokens.astype(jnp.int32).reshape(B, L, 1)
    table = jnp.zeros((VP, H), jnp.bfloat16).at[:V, :].set(emb_table.astype(jnp.bfloat16))
    wt = jnp.zeros((H, HP), jnp.bfloat16).at[:, :H].set(weight.T.astype(jnp.bfloat16))
    b2 = jnp.zeros((1, HP), jnp.float32).at[0, :H].set(bias.astype(jnp.float32))

    grid = (B // tb, L // tl)

    out = pl.pallas_call(
        sentence_encoder_kernel,
        out_shape=jax.ShapeDtypeStruct((B, HP), jnp.float32),
        grid=grid,
        in_specs=[
            pl.BlockSpec((tb, tl, 1), lambda bi, li: (bi, li, 0)),   # token tile (pipelined)
            pl.BlockSpec((VP, H), lambda bi, li: (0, 0)),            # table: VMEM-resident
            pl.BlockSpec((H, HP), lambda bi, li: (0, 0)),            # W.T (padded): resident
            pl.BlockSpec((1, HP), lambda bi, li: (0, 0)),            # bias (padded): resident
        ],
        out_specs=pl.BlockSpec((tb, HP), lambda bi, li: (bi, 0)),
        scratch_shapes=[pltpu.VMEM((tb, HP), jnp.float32)],          # running-max accumulator
        compiler_params=pltpu.CompilerParams(
            dimension_semantics=("parallel", "arbitrary"),
            vmem_limit_bytes=32 * 1024 * 1024,
        ),
    )(tokens3, table, wt, b2)

    return out[:, :H]


def reference(tokens, emb_table, weight, bias):
    emb = jnp.take(emb_table, tokens, axis=0)
    y = jnp.einsum("bld,hd->blh", emb, weight) + bias[None, None, :]
    return jnp.max(y, axis=1)


if __name__ == "__main__":
    # config: hidden_size=32, vocab_size=30 -> embedding table has vocab_size+1 = 31 rows
    hidden_size = 32
    vocab_size = 30
    V = vocab_size + 1
    B, L, H = 2, 8, hidden_size

    key = jax.random.PRNGKey(0)
    k_emb, k_w, k_b, k_tok = jax.random.split(key, 4)

    emb_table = jax.random.normal(k_emb, (V, H), dtype=jnp.float32) * 0.1
    emb_table = emb_table.at[0].set(0.0)                 # padding_idx=0 -> zero row
    weight = jax.random.normal(k_w, (H, H), dtype=jnp.float32) * 0.1   # (out, in)
    bias = jax.random.normal(k_b, (H,), dtype=jnp.float32) * 0.1
    tokens = jax.random.randint(k_tok, (B, L), 0, V, dtype=jnp.int32)

    out = sentence_encoder(tokens, emb_table, weight, bias)
    out = jax.block_until_ready(out)

    ref = reference(tokens, emb_table, weight, bias)
    assert out.shape == (B, H), out.shape
    # bf16 MXU inputs with f32 accumulation -> compare against the f32 reference at bf16 tolerance.
    assert jnp.allclose(out, ref, atol=5e-3, rtol=5e-3), "mismatch vs reference"

    print("KERNEL_OK")
</pallas_src>

<mosaic_0001>
module attributes {stable_mosaic.version = 11 : i64} {
  func.func @sentence_encoder_kernel(%arg0: i32, %arg1: i32, %arg2: memref<2x8x1xi32, #tpu.memory_space<vmem>>, %arg3: memref<32x32xbf16, #tpu.memory_space<vmem>>, %arg4: memref<32x128xbf16, #tpu.memory_space<vmem>>, %arg5: memref<1x128xf32, #tpu.memory_space<vmem>>, %arg6: memref<2x128xf32, #tpu.memory_space<vmem>>, %arg7: memref<2x128xf32, #tpu.memory_space<vmem>>) attributes {dimension_semantics = [#tpu.dimension_semantics<parallel>, #tpu.dimension_semantics<arbitrary>], iteration_bounds = array<i64: 1, 1>, scalar_prefetch = 0 : i64, scratch_operands = 1 : i64, tpu.core_type = #tpu.core_type<tc>, window_params = [{transform_indices = @transform_0, window_bounds = array<i64: 2, 8, 1>}, {pipeline_mode = #tpu.pipeline_mode<synchronous>, transform_indices = @transform_1, window_bounds = array<i64: 32, 32>}, {pipeline_mode = #tpu.pipeline_mode<synchronous>, transform_indices = @transform_2, window_bounds = array<i64: 32, 128>}, {pipeline_mode = #tpu.pipeline_mode<synchronous>, transform_indices = @transform_3, window_bounds = array<i64: 1, 128>}, {transform_indices = @transform_4, window_bounds = array<i64: 2, 128>}]} {
    %c0_i32 = arith.constant 0 : i32
    %0 = arith.cmpi eq, %arg1, %c0_i32 : i32
    %1 = arith.extui %0 : i1 to i32
    %c0_i32_0 = arith.constant 0 : i32
    %2 = arith.cmpi ne, %1, %c0_i32_0 : i32
    scf.if %2 {
      %cst_17 = arith.constant 0xFF800000 : f32
      %25 = vector.broadcast %cst_17 : f32 to vector<2x128xf32>
      %c0_18 = arith.constant 0 : index
      %c0_19 = arith.constant 0 : index
      %26 = vector.load %arg7[%c0_18, %c0_19] : memref<2x128xf32, #tpu.memory_space<vmem>>, vector<2x128xf32>
      tpu.vector_store %arg7[%c0_18, %c0_19], %25 {strides = array<i32>} : memref<2x128xf32, #tpu.memory_space<vmem>>, vector<2x128xf32>,
    } else {
    }
    %c0 = arith.constant 0 : index
    %c0_1 = arith.constant 0 : index
    %c0_2 = arith.constant 0 : index
    %3 = vector.load %arg2[%c0, %c0_1, %c0_2] : memref<2x8x1xi32, #tpu.memory_space<vmem>>, vector<2x8x1xi32>
    %4 = tpu.iota {dimensions = array<i32: 2>} : vector<2x8x32xi32>
    %5 = vector.broadcast %3 : vector<2x8x1xi32> to vector<2x8x32xi32>
    %6 = arith.cmpi eq, %5, %4 : vector<2x8x32xi32>
    %cst = arith.constant 1.000000e+00 : f32
    %cst_3 = arith.constant 0.000000e+00 : f32
    %7 = vector.broadcast %cst : f32 to vector<2x8x32xf32>
    %8 = vector.broadcast %cst_3 : f32 to vector<2x8x32xf32>
    %9 = arith.select %6, %7, %8 : vector<2x8x32xi1>, vector<2x8x32xf32>
    %10 = arith.truncf %9 : vector<2x8x32xf32> to vector<2x8x32xbf16>
    %11 = vector.shape_cast %10 : vector<2x8x32xbf16> to vector<16x32xbf16>
    %c0_4 = arith.constant 0 : index
    %c0_5 = arith.constant 0 : index
    %12 = vector.load %arg3[%c0_4, %c0_5] : memref<32x32xbf16, #tpu.memory_space<vmem>>, vector<32x32xbf16>
    %cst_6 = arith.constant dense<0.000000e+00> : vector<16x32xf32>
    %13 = tpu.matmul %11, %12, %cst_6 {dimension_numbers = #tpu.dot_dimension_numbers<[1], [0], [0], [1], [0, 0, 1, 1], [], []>} : vector<16x32xbf16>, vector<32x32xbf16>, vector<16x32xf32> -> vector<16x32xf32>
    %14 = arith.truncf %13 : vector<16x32xf32> to vector<16x32xbf16>
    %c0_7 = arith.constant 0 : index
    %c0_8 = arith.constant 0 : index
    %15 = vector.load %arg4[%c0_7, %c0_8] : memref<32x128xbf16, #tpu.memory_space<vmem>>, vector<32x128xbf16>
    %cst_9 = arith.constant dense<0.000000e+00> : vector<16x128xf32>
    %16 = tpu.matmul %14, %15, %cst_9 {dimension_numbers = #tpu.dot_dimension_numbers<[1], [0], [0], [1], [0, 0, 1, 1], [], []>} : vector<16x32xbf16>, vector<32x128xbf16>, vector<16x128xf32> -> vector<16x128xf32>
    %17 = vector.shape_cast %16 : vector<16x128xf32> to vector<2x8x128xf32>
    %cst_10 = arith.constant dense<0xFF800000> : vector<2x128xf32>
    %18 = vector.multi_reduction <maximumf>, %17, %cst_10 [1] : vector<2x8x128xf32> to vector<2x128xf32>
    %c0_11 = arith.constant 0 : index
    %c0_12 = arith.constant 0 : index
    %19 = vector.load %arg7[%c0_11, %c0_12] : memref<2x128xf32, #tpu.memory_space<vmem>>, vector<2x128xf32>
    %20 = arith.maximumf %19, %18 : vector<2x128xf32>
    %c0_13 = arith.constant 0 : index
    %c0_14 = arith.constant 0 : index
    %21 = vector.load %arg7[%c0_13, %c0_14] : memref<2x128xf32, #tpu.memory_space<vmem>>, vector<2x128xf32>
    tpu.vector_store %arg7[%c0_13, %c0_14], %20 {strides = array<i32>} : memref<2x128xf32, #tpu.memory_space<vmem>>, vector<2x128xf32>,
    %c0_i32_15 = arith.constant 0 : i32
    %22 = arith.cmpi eq, %arg1, %c0_i32_15 : i32
    %23 = arith.extui %22 : i1 to i32
    %c0_i32_16 = arith.constant 0 : i32
    %24 = arith.cmpi ne, %23, %c0_i32_16 : i32
    scf.if %24 {
      %c0_17 = arith.constant 0 : index
      %c0_18 = arith.constant 0 : index
      %25 = vector.load %arg7[%c0_17, %c0_18] : memref<2x128xf32, #tpu.memory_space<vmem>>, vector<2x128xf32>
      %c0_19 = arith.constant 0 : index
      %c0_20 = arith.constant 0 : index
      %26 = vector.load %arg5[%c0_19, %c0_20] : memref<1x128xf32, #tpu.memory_space<vmem>>, vector<1x128xf32>
      %27 = vector.broadcast %26 : vector<1x128xf32> to vector<2x128xf32>
      %28 = arith.addf %25, %27 : vector<2x128xf32>
      %c0_21 = arith.constant 0 : index
      %c0_22 = arith.constant 0 : index
      %29 = vector.load %arg6[%c0_21, %c0_22] : memref<2x128xf32, #tpu.memory_space<vmem>>, vector<2x128xf32>
      tpu.vector_store %arg6[%c0_21, %c0_22], %28 {strides = array<i32>} : memref<2x128xf32, #tpu.memory_space<vmem>>, vector<2x128xf32>,
    } else {
    }
    return
  }
  func.func @transform_0(%arg0: i32, %arg1: i32) -> (i32, i32, i32) {
    %c0_i32 = arith.constant 0 : i32
    %c0_i32_0 = arith.constant 0 : i32
    return %arg0, %arg1, %c0_i32 : i32, i32, i32
  }
  func.func @transform_1(%arg0: i32, %arg1: i32) -> (i32, i32) {
    %c0_i32 = arith.constant 0 : i32
    %c0_i32_0 = arith.constant 0 : i32
    %c0_i32_1 = arith.constant 0 : i32
    return %c0_i32, %c0_i32_0 : i32, i32
  }
  func.func @transform_2(%arg0: i32, %arg1: i32) -> (i32, i32) {
    %c0_i32 = arith.constant 0 : i32
    %c0_i32_0 = arith.constant 0 : i32
    %c0_i32_1 = arith.constant 0 : i32
    return %c0_i32, %c0_i32_0 : i32, i32
  }
  func.func @transform_3(%arg0: i32, %arg1: i32) -> (i32, i32) {
    %c0_i32 = arith.constant 0 : i32
    %c0_i32_0 = arith.constant 0 : i32
    %c0_i32_1 = arith.constant 0 : i32
    return %c0_i32, %c0_i32_0 : i32, i32
  }
  func.func @transform_4(%arg0: i32, %arg1: i32) -> (i32, i32) {
    %c0_i32 = arith.constant 0 : i32
    %c0_i32_0 = arith.constant 0 : i32
    return %arg0, %c0_i32 : i32, i32
  }
}

</mosaic_0001>

<llo_original>
// kernel: tpu_custom_call.1
$region0: #{tpu_custom_call.1}
  #allocation0 [shape = 'u32[]', space=smem, size = 0x4, offset = 0x4, fixed_abs, tag = 'smem constant byte address 0x4 - core index']
  #allocation1 [shape = 'u32[144,128]{1,0:T(1,128)}', space=vmem, size = 0x12000, scoped, tag = 'internal scratch']
  #allocation2 [shape = 'f32[2,128]{1,0:T(2,128)}', space=vmem, size = 0x400, scoped, tag = 'scratch operand']
  %s0 = inlined_call_operand.vmem [shape: s32[2,8,1], index: 0, kind: input, shape index: {}]
  %s1 = inlined_call_operand.vmem [shape: bf16[32,32], index: 1, kind: input, shape index: {}]
  %s2 = inlined_call_operand.hbm [shape: bf16[32,128], index: 2, kind: input, shape index: {}]
  %s3 = inlined_call_operand.vmem [shape: f32[1,128], index: 3, kind: input, shape index: {}]
  %s4 = inlined_call_operand.hbm [shape: f32[2,128], index: 4, kind: output, shape index: {}]
  %s5 = sld [smem:[#allocation0]]
  $region38: #{tpu_custom_call.1} parent=0
    _
  %s7 = ssub.s32 1, %s5
  %s8 = scalar_select 0, %s7, %s5
  $region1: #{tpu_custom_call.1} parent=0
    #allocation3 [shape = 'u8[8192]{0}', space=vmem, size = 0x2000, scoped, tag = 'input window, operand 2, single buffered']
    #allocation4 [shape = 's32[1]{0}', space=sflag, size = 0x4, scoped, tag = 'scoped memory for tpu_custom_call.1']
    #allocation5 [shape = 's32[1]{0}', space=sflag, size = 0x4, scoped, tag = 'scoped memory for tpu_custom_call.1']
    #allocation6 [shape = 'u8[1024]{0}', space=vmem, size = 0x400, scoped, tag = 'output window, operand 0, single buffered']
    %9 = vsyncpa [#allocation4], 0
    %10 = vsyncpa [#allocation5], 0
    // Predicated region
    $region2: #{tpu_custom_call.1} parent=1 // pred_check
      _
    $region3: #{tpu_custom_call.1} parent=1 // pred_check_branch
      %12 = sbr.rel (0) target = $region5
    $region4: #{tpu_custom_call.1} parent=1 // pred_region
      _
    $region5: #{tpu_custom_call.1} parent=1 // pred_fallthru
      _
    // Predicated region
    $region6: #{tpu_custom_call.1} parent=1 // pred_check
      _
    $region7: #{tpu_custom_call.1} parent=1 // pred_check_branch
      %14 = sbr.rel (0) target = $region9
    $region8: #{tpu_custom_call.1} parent=1 // pred_region
      _
    $region9: #{tpu_custom_call.1} parent=1 // pred_fallthru
      _
    // Predicated region
    $region10: #{tpu_custom_call.1} parent=1 // pred_check
      _
    $region11: #{tpu_custom_call.1} parent=1 // pred_check_branch
      %16 = sbr.rel (0) target = $region13
    $region12: #{tpu_custom_call.1} parent=1 // pred_region
      %s18 = ssub.s32 256, 256
      %19 = vsyncadd [#allocation4], %s18
      %s20 = sshll.u32 [#allocation3], 4
      %s21 = int_to_ptr.vmem [resolvable:$true] %s20
      %26 = dma.hbm_to_vmem [thread:$0]  %s2, 256, %s21, [#allocation4], 64, 64, 4
    $region13: #{tpu_custom_call.1} parent=1 // pred_fallthru
      _
    // Predicated region
    $region14: #{tpu_custom_call.1} parent=1 // pred_check
      _
    $region15: #{tpu_custom_call.1} parent=1 // pred_check_branch
      %28 = sbr.rel (0) target = $region17
    $region16: #{tpu_custom_call.1} parent=1 // pred_region
      _
    $region17: #{tpu_custom_call.1} parent=1 // pred_fallthru
      _
    // Predicated region
    $region18: #{tpu_custom_call.1} parent=1 // pred_check
      _
    $region19: #{tpu_custom_call.1} parent=1 // pred_check_branch
      %30 = sbr.rel (0) target = $region21
    $region20: #{tpu_custom_call.1} parent=1 // pred_region
      %31 = dma.done [#allocation4], 256
    $region21: #{tpu_custom_call.1} parent=1 // pred_fallthru
      _
    %p33 = scmp.eq.s32.totalorder 0, 0
    // Predicated region
    $region22: #{tpu_custom_call.1} parent=1 // pred_check
      %p34 = pneg %p33
    $region23: #{tpu_custom_call.1} parent=1 // pred_check_branch
      %36 = sbr.rel (%p34) target = $region25
    $region24: #{tpu_custom_call.1} parent=1 // pred_region
      %37 = vst [vmem:[#allocation2] sm:$0x3] -inf
    $region25: #{tpu_custom_call.1} parent=1 // pred_fallthru
      _
    %v38 = vld [vmem:[%s0] sm:$0xff]
    %v39 = vld [vmem:[%s0 + $0x8] sm:$0xff]
    %v40 = vlaneseq
    %v41 = vand.u32 %v40, 127
    %42 = vset.pattern.permute.xlu0 0
    %43 = vperm.xlu0 %42, %v38
    %v44 = vpop.permute.xlu0 %43
    %45 = vset.pattern.permute.xlu0 0
    %46 = vperm.xlu0 %45, %v39
    %v47 = vpop.permute.xlu0 %46
    %vm48 = vcmp.eq.s32.totalorder %v44, %v41
    %vm49 = vcmp.eq.s32.totalorder %v47, %v41
    %v50 = vsel %vm48, 1.0, 0.0
    %v51 = vsel %vm49, 1.0, 0.0
    %v52 = vpack.c.bf16 %v50, %v50
    %v53 = vpack.c.bf16 %v51, %v51
    %v54 = vld [vmem:[%s1] sm:$0xf]
    %v55 = vld [vmem:[%s1 + $0x4] sm:$0xf]
    %v56 = vld [vmem:[%s1 + $0x8] sm:$0xf]
    %v57 = vld [vmem:[%s1 + $0xc] sm:$0xf]
    %v60 = vunpack.c.l.b16 %v52
    %v61 = vunpack.c.l.b16 %v53
    %v62 = vpack.c.b16 %v61, %v60
    %v67 = vunpack.c.l.b16 %v54
    %v68 = vunpack.c.l.b16 %v55
    %v69 = vunpack.c.l.b16 %v56
    %v70 = vunpack.c.l.b16 %v57
    %v71 = vpack.c.b16 %v68, %v67
    %v72 = vpack.c.b16 %v70, %v69
    %vm75 = vcmask 261120
    %v77 = vsel %vm75, %v62, 0
    %79 = vmatprep.subr.bf16.mxu0 0
    %80 = vmatpush1.bf16.msra.mxu0 %v71
    %81 = vmatprep.subr.bf16.mxu0 0
    %82 = vmatpush1.bf16.msra.mxu0 %v72
    %83 = vmatprep.subr.bf16.mxu0 0
    %84 = vmatpush1.bf16.msra.mxu0 0
    %85 = vmatprep.subr.bf16.mxu0 0
    %86 = vmatpush1.bf16.msra.mxu0 0
    %87 = vmatprep.subr.bf16.mxu0 0
    %88 = vmatpush1.bf16.msra.mxu0 0
    %89 = vmatprep.subr.bf16.mxu0 0
    %90 = vmatpush1.bf16.msra.mxu0 0
    %91 = vmatprep.subr.bf16.mxu0 0
    %92 = vmatpush1.bf16.msra.mxu0 0
    %93 = vmatprep.subr.bf16.mxu0 0
    %94 = vmatpush1.bf16.msra.mxu0 0
    %95 = vmatprep.subr.bf16.mxu0 0
    %96 = vmatpush1.bf16.msra.mxu0 0
    %97 = vmatprep.subr.bf16.mxu0 0
    %98 = vmatpush1.bf16.msra.mxu0 0
    %99 = vmatprep.subr.bf16.mxu0 0
    %100 = vmatpush1.bf16.msra.mxu0 0
    %101 = vmatprep.subr.bf16.mxu0 0
    %102 = vmatpush1.bf16.msra.mxu0 0
    %103 = vmatprep.subr.bf16.mxu0 0
    %104 = vmatpush1.bf16.msra.mxu0 0
    %105 = vmatprep.subr.bf16.mxu0 0
    %106 = vmatpush1.bf16.msra.mxu0 0
    %107 = vmatprep.subr.bf16.mxu0 0
    %108 = vmatpush1.bf16.msra.mxu0 0
    %109 = vmatprep.subr.bf16.mxu0 0
    %110 = vmatpush1.bf16.msra.mxu0 0
    %111 = vmatprep.mubr.bf16.mxu0 0
    %112 = vmatmul.mubr.bf16.gmra.mrb[0].mxu0 %v77
    %v113 = vpop.f32.mrb[0].mxu0
    %v114 = vadd.f32 0.0, %v113
    %v115 = vpop.f32.mrb[0].mxu0
    %v116 = vpop.f32.mrb[0].mxu0
    %v117 = vadd.f32 0.0, %v116
    %v118 = vpop.f32.mrb[0].mxu0
    %119 = vdwg.mxu0
    %v120 = vpack.c.bf16 %v117, %v114
    %v121 = vld [vmem:[#allocation3] sm:$0xf]
    %v122 = vld [vmem:[#allocation3 + $0x4] sm:$0xf]
    %v123 = vld [vmem:[#allocation3 + $0x8] sm:$0xf]
    %v124 = vld [vmem:[#allocation3 + $0xc] sm:$0xf]
    %v129 = vunpack.c.l.b16 %v121
    %v130 = vunpack.c.l.b16 %v122
    %v131 = vunpack.c.l.b16 %v123
    %v132 = vunpack.c.l.b16 %v124
    %v133 = vpack.c.b16 %v130, %v129
    %v134 = vpack.c.b16 %v132, %v131
    %v138 = vsel %vm75, %v120, 0
    %140 = vmatprep.subr.bf16.mxu0 0
    %141 = vmatpush1.bf16.msra.mxu0 %v133
    %142 = vmatprep.subr.bf16.mxu0 0
    %143 = vmatpush1.bf16.msra.mxu0 %v134
    %144 = vmatprep.subr.bf16.mxu0 0
    %145 = vmatpush1.bf16.msra.mxu0 0
    %146 = vmatprep.subr.bf16.mxu0 0
    %147 = vmatpush1.bf16.msra.mxu0 0
    %148 = vmatprep.subr.bf16.mxu0 0
    %149 = vmatpush1.bf16.msra.mxu0 0
    %150 = vmatprep.subr.bf16.mxu0 0
    %151 = vmatpush1.bf16.msra.mxu0 0
    %152 = vmatprep.subr.bf16.mxu0 0
    %153 = vmatpush1.bf16.msra.mxu0 0
    %154 = vmatprep.subr.bf16.mxu0 0
    %155 = vmatpush1.bf16.msra.mxu0 0
    %156 = vmatprep.subr.bf16.mxu0 0
    %157 = vmatpush1.bf16.msra.mxu0 0
    %158 = vmatprep.subr.bf16.mxu0 0
    %159 = vmatpush1.bf16.msra.mxu0 0
    %160 = vmatprep.subr.bf16.mxu0 0
    %161 = vmatpush1.bf16.msra.mxu0 0
    %162 = vmatprep.subr.bf16.mxu0 0
    %163 = vmatpush1.bf16.msra.mxu0 0
    %164 = vmatprep.subr.bf16.mxu0 0
    %165 = vmatpush1.bf16.msra.mxu0 0
    %166 = vmatprep.subr.bf16.mxu0 0
    %167 = vmatpush1.bf16.msra.mxu0 0
    %168 = vmatprep.subr.bf16.mxu0 0
    %169 = vmatpush1.bf16.msra.mxu0 0
    %170 = vmatprep.subr.bf16.mxu0 0
    %171 = vmatpush1.bf16.msra.mxu0 0
    %172 = vmatprep.mubr.bf16.mxu0 0
    %173 = vmatmul.mubr.bf16.gmra.mrb[0].mxu0 %v138
    %v174 = vpop.f32.mrb[0].mxu0
    %v175 = vadd.f32 0.0, %v174
    %v176 = vpop.f32.mrb[0].mxu0
    %v177 = vpop.f32.mrb[0].mxu0
    %v178 = vadd.f32 0.0, %v177
    %v179 = vpop.f32.mrb[0].mxu0
    %180 = vdwg.mxu0
    %v181 = vrot.slane %v175, 4
    %v182 = vmax.f32 %v175, %v181
    %v183 = vrot.slane %v182, 2
    %v184 = vmax.f32 %v182, %v183
    %v185 = vrot.slane %v184, 1
    %v186 = vmax.f32 %v184, %v185
    %v187 = vrot.slane %v178, 4
    %v188 = vmax.f32 %v178, %v187
    %v189 = vrot.slane %v188, 2
    %v190 = vmax.f32 %v188, %v189
    %v191 = vrot.slane %v190, 1
    %v192 = vmax.f32 %v190, %v191
    %v193 = vld [vmem:[#allocation2] sm:$0x3]
    %vm196 = vcmask 1041409
    %v197 = vsel %vm196, %v192, %v186
    %v199 = vmax.f32 %v193, %v197
    %200 = vst [vmem:[#allocation2] sm:$0x3] %v199
    // Predicated region
    $region26: #{tpu_custom_call.1} parent=1 // pred_check
      %p201 = pneg %p33
    $region27: #{tpu_custom_call.1} parent=1 // pred_check_branch
      %203 = sbr.rel (%p201) target = $region29
    $region28: #{tpu_custom_call.1} parent=1 // pred_region
      %v204 = vld [vmem:[#allocation2] sm:$0x3]
      %v205 = vld [vmem:[%s3] sm:$0x1]
      %v207 = vlaneseq
      %v208 = vshrl.u32 %v207, 7
      %v209 = vsub.s32 0, %v208
      %v210 = vrot.slane %v205, %v209
      %v212 = vadd.f32 %v204, %v210
      %213 = vst [vmem:[#allocation6] sm:$0x3] %v212
    $region29: #{tpu_custom_call.1} parent=1 // pred_fallthru
      _
    // Predicated region
    $region30: #{tpu_custom_call.1} parent=1 // pred_check
      _
    $region31: #{tpu_custom_call.1} parent=1 // pred_check_branch
      %215 = sbr.rel (0) target = $region33
    $region32: #{tpu_custom_call.1} parent=1 // pred_region
      %s217 = ssub.s32 32, 32
      %218 = vsyncadd [#allocation5], %s217
      %s220 = sshll.u32 [#allocation6], 4
      %s221 = int_to_ptr.vmem [resolvable:$true] %s220
      %223 = dma.vmem_to_hbm [thread:$0]  %s221, 32, %s4, [#allocation5]
    $region33: #{tpu_custom_call.1} parent=1 // pred_fallthru
      _
    // Predicated region
    $region34: #{tpu_custom_call.1} parent=1 // pred_check
      _
    $region35: #{tpu_custom_call.1} parent=1 // pred_check_branch
      %225 = sbr.rel (0) target = $region37
    $region36: #{tpu_custom_call.1} parent=1 // pred_region
      %226 = dma.done [#allocation5], 32
    $region37: #{tpu_custom_call.1} parent=1 // pred_fallthru
      _
    %227 = vsyncpa [#allocation4], 1
    %228 = vsyncpa [#allocation5], 1

</llo_original>
